<compile_context>
chip_gen: v7x
topology: tpu7x:2x2x1
jax: 0.10.0
libtpu: 0.0.40
codegen_flags: <defaults>
</compile_context>

<pallas_src>
import jax
import jax.numpy as jnp
from jax.experimental import pallas as pl
from jax.experimental.pallas import tpu as pltpu


def _embedding_kernel(x_ref, w_ref, b_ref, o_ref):
    # (tile_rows, Kp) @ (Kp, Np) on the MXU with f32 accumulation, fused bias add.
    acc = jnp.dot(x_ref[...], w_ref[...], preferred_element_type=jnp.float32)
    o_ref[...] = (acc + b_ref[...]).astype(o_ref.dtype)


def _round_up(a, m):
    return ((a + m - 1) // m) * m


def _choose_pack(rows, k0, n0, itemsize, max_weight_bytes=8 << 20):
    """Largest p <= ceil(128 / min(k0, n0)) that divides `rows` (bounded weight size)."""
    if k0 >= 128 and n0 >= 128:
        return 1
    p_target = max(-(-128 // k0), -(-128 // n0))   # ceil divisions
    p_target = min(p_target, 16)
    while p_target > 1 and (p_target * k0) * (p_target * n0) * itemsize > max_weight_bytes:
        p_target -= 1
    for p in range(p_target, 0, -1):
        if rows % p == 0:
            return p
    return 1


def embedding_forward(x, w1, b1, w2, b2, *, target_tile_bytes=2 << 20, tile_rows=None):
    """x: (B, N, d_in, 2).  w1:(1,2,1,1) b1:(1,) w2:(d_model,d_in,1,1) b2:(d_model,).
    Returns (B, N, d_model) in x's (f32/bf16) dtype."""
    B, N, d_in, two = x.shape
    assert two == 2, "last dim of input must be 2 (conv1 in_channels)"
    d_model = w2.shape[0]
    rows = B * N

    # dtype policy: stream bf16 natively (half the HBM traffic), otherwise f32.
    if x.dtype == jnp.bfloat16:
        in_dtype, sublane = jnp.bfloat16, 16
    else:
        in_dtype, sublane = jnp.float32, 8
        if x.dtype != jnp.float32:
            x = x.astype(jnp.float32)
    itemsize = jnp.dtype(in_dtype).itemsize

    # ---- Fold conv1 (scalar mix over the size-2 channel) into conv2 ----
    w1_0 = w1[0, 0, 0, 0].astype(jnp.float32)
    w1_1 = w1[0, 1, 0, 0].astype(jnp.float32)
    w2t = w2[:, :, 0, 0].T.astype(jnp.float32)                   # (d_in, d_model)
    # Row order m*2+c matches the contiguous (rows, 2*d_in) view of x.
    w_fused = jnp.stack([w2t * w1_0, w2t * w1_1], axis=1)        # (d_in, 2, d_model)
    w_fused = w_fused.reshape(2 * d_in, d_model)
    b_fused = b2.astype(jnp.float32) + b1[0].astype(jnp.float32) * jnp.sum(w2t, axis=0)

    k0, n0 = 2 * d_in, d_model

    # ---- Lane-dense packing: p logical rows per physical row (block-diag weight) ----
    p = _choose_pack(rows, k0, n0, itemsize)
    kp, np_ = p * k0, p * n0
    rows_p = rows // p

    x_flat = x.reshape(rows_p, kp)                               # contiguous => free
    if p > 1:
        w_fused = jnp.kron(jnp.eye(p, dtype=w_fused.dtype), w_fused)   # (kp, np_)
        b_fused = jnp.tile(b_fused, p)
    w_fused = w_fused.astype(in_dtype)
    b_fused = b_fused.reshape(1, np_).astype(jnp.float32)

    # ---- Row-tile sizing: ~target_tile_bytes of (x-tile + out-tile) per step ----
    MIN_GRID_STEPS = 8   # >= 4 row tiles per v7x TensorCore under "parallel"
    if tile_rows is not None:
        tr = max(1, min(int(tile_rows), rows_p))
        if tr < rows_p:
            tr = max(sublane, (tr // sublane) * sublane)
    elif rows_p <= sublane:
        tr = rows_p
    else:
        bytes_per_row = (kp + np_) * itemsize
        tr = max(sublane, (int(target_tile_bytes) // bytes_per_row) // sublane * sublane)
        if rows_p >= MIN_GRID_STEPS * sublane:
            tr = min(tr, _round_up(pl.cdiv(rows_p, MIN_GRID_STEPS), sublane))
        if tr >= rows_p:
            tr = rows_p

    grid = (pl.cdiv(rows_p, tr),)   # partial last block handled by Pallas (no host pad)

    # ---- Weight buffering + VMEM budget ----
    w_bytes = kp * np_ * itemsize
    single_buffer_w = w_bytes > (4 << 20)
    if single_buffer_w:
        # Grid-invariant: one resident buffer is enough; saves VMEM on v7x (64 MiB).
        w_spec = pl.BlockSpec((kp, np_), lambda i: (0, 0), pipeline_mode=pl.Buffered(1))
        b_spec = pl.BlockSpec((1, np_), lambda i: (0, 0), pipeline_mode=pl.Buffered(1))
    else:
        w_spec = pl.BlockSpec((kp, np_), lambda i: (0, 0))
        b_spec = pl.BlockSpec((1, np_), lambda i: (0, 0))

    vmem_needed = (2 * tr * (kp + np_) * itemsize            # double-buffered x + out tiles
                   + (1 if single_buffer_w else 2) * w_bytes
                   + 2 * np_ * 4
                   + (1 << 20))                              # slack
    vmem_limit = int(min(max(vmem_needed, 32 << 20), 100 << 20))

    out_packed = pl.pallas_call(
        _embedding_kernel,
        out_shape=jax.ShapeDtypeStruct((rows_p, np_), in_dtype),
        grid_spec=pl.GridSpec(
            grid=grid,
            in_specs=[
                pl.BlockSpec((tr, kp), lambda i: (i, 0)),    # packed x tile
                w_spec,                                      # fused block-diag weight
                b_spec,                                      # fused bias (f32)
            ],
            out_specs=pl.BlockSpec((tr, np_), lambda i: (i, 0)),
        ),
        compiler_params=pltpu.CompilerParams(
            dimension_semantics=("parallel",),               # row tiles shard across v7x TCs
            vmem_limit_bytes=vmem_limit,
        ),
    )(x_flat, w_fused, b_fused)

    # Un-pack: contiguous reshape, no copy / no slicing (out_shape is exact).
    return out_packed.reshape(B, N, d_model)


def _init_params(key, d_in, d_model):
    """Deterministic xavier-uniform-style init matching the module's shapes."""
    k1, k2, k3, k4 = jax.random.split(key, 4)
    bound1 = (6.0 / (2 + 1)) ** 0.5
    w1 = jax.random.uniform(k1, (1, 2, 1, 1), jnp.float32, -bound1, bound1)
    b1 = jax.random.uniform(k2, (1,), jnp.float32, -0.5, 0.5)
    bound2 = (6.0 / (d_in + d_model)) ** 0.5
    w2 = jax.random.uniform(k3, (d_model, d_in, 1, 1), jnp.float32, -bound2, bound2)
    b2 = jax.random.uniform(k4, (d_model,), jnp.float32, -0.5, 0.5)
    return w1, b1, w2, b2


def _reference(x, w1, b1, w2, b2):
    """Pure-JAX reference of the PyTorch forward."""
    y1 = x[..., 0] * w1[0, 0, 0, 0] + x[..., 1] * w1[0, 1, 0, 0] + b1[0]   # (B,N,d_in)
    out = jnp.einsum("bnm,om->bno", y1, w2[:, :, 0, 0]) + b2               # (B,N,d_model)
    return out


if __name__ == "__main__":
    B, N, d_in, d_model = 2, 8, 8, 32

    key = jax.random.PRNGKey(0)
    kx, kparams = jax.random.split(key)
    x = jax.random.normal(kx, (B, N, d_in, 2), dtype=jnp.float32)
    w1, b1, w2, b2 = _init_params(kparams, d_in, d_model)

    # 1) Packed (p=8 -> 128-lane input, 256-lane output), f32.
    out = jax.block_until_ready(embedding_forward(x, w1, b1, w2, b2))
    ref = _reference(x, w1, b1, w2, b2)
    assert out.shape == (B, N, d_model), out.shape
    assert jnp.allclose(out, ref, atol=1e-5, rtol=1e-5), "mismatch vs reference"

    # 2) Ragged row count (rows=111, p=3) + forced small tile: exercises the
    #    no-host-padding partial-last-block path.
    B2, N2 = 3, 37
    x2 = jax.random.normal(kx, (B2, N2, d_in, 2), dtype=jnp.float32)
    out2 = jax.block_until_ready(embedding_forward(x2, w1, b1, w2, b2, tile_rows=8))
    ref2 = _reference(x2, w1, b1, w2, b2)
    assert out2.shape == (B2, N2, d_model), out2.shape
    assert jnp.allclose(out2, ref2, atol=1e-5, rtol=1e-5), "mismatch vs reference (ragged)"

    # 3) bf16 streaming path (half HBM traffic); loose tolerance structural check.
    x3 = x.astype(jnp.bfloat16)
    out3 = jax.block_until_ready(embedding_forward(x3, w1, b1, w2, b2))
    ref3 = _reference(x3.astype(jnp.float32), w1, b1, w2, b2)
    assert out3.shape == (B, N, d_model) and out3.dtype == jnp.bfloat16
    assert jnp.allclose(out3.astype(jnp.float32), ref3, atol=0.25, rtol=0.1), "bf16 mismatch"

    print("KERNEL_OK")
</pallas_src>

<mosaic_0001>
module attributes {stable_mosaic.version = 11 : i64} {
  func.func @_embedding_kernel(%arg0: i32, %arg1: memref<2x128xf32, #tpu.memory_space<vmem>>, %arg2: memref<128x256xf32, #tpu.memory_space<vmem>>, %arg3: memref<1x256xf32, #tpu.memory_space<vmem>>, %arg4: memref<2x256xf32, #tpu.memory_space<vmem>>) attributes {dimension_semantics = [#tpu.dimension_semantics<parallel>], iteration_bounds = array<i64: 1>, scalar_prefetch = 0 : i64, scratch_operands = 0 : i64, tpu.core_type = #tpu.core_type<tc>, window_params = [{transform_indices = @transform_0, window_bounds = array<i64: 2, 128>}, {pipeline_mode = #tpu.pipeline_mode<synchronous>, transform_indices = @transform_1, window_bounds = array<i64: 128, 256>}, {pipeline_mode = #tpu.pipeline_mode<synchronous>, transform_indices = @transform_2, window_bounds = array<i64: 1, 256>}, {transform_indices = @transform_3, window_bounds = array<i64: 2, 256>}]} {
    %c0 = arith.constant 0 : index
    %c0_0 = arith.constant 0 : index
    %0 = vector.load %arg1[%c0, %c0_0] : memref<2x128xf32, #tpu.memory_space<vmem>>, vector<2x128xf32>
    %c0_1 = arith.constant 0 : index
    %c0_2 = arith.constant 0 : index
    %1 = vector.load %arg2[%c0_1, %c0_2] : memref<128x256xf32, #tpu.memory_space<vmem>>, vector<128x256xf32>
    %cst = arith.constant dense<0.000000e+00> : vector<2x256xf32>
    %2 = tpu.matmul %0, %1, %cst {dimension_numbers = #tpu.dot_dimension_numbers<[1], [0], [0], [1], [0, 0, 1, 1], [], []>} : vector<2x128xf32>, vector<128x256xf32>, vector<2x256xf32> -> vector<2x256xf32>
    %c0_3 = arith.constant 0 : index
    %c0_4 = arith.constant 0 : index
    %3 = vector.load %arg3[%c0_3, %c0_4] : memref<1x256xf32, #tpu.memory_space<vmem>>, vector<1x256xf32>
    %4 = vector.broadcast %3 : vector<1x256xf32> to vector<2x256xf32>
    %5 = arith.addf %2, %4 : vector<2x256xf32>
    %c0_5 = arith.constant 0 : index
    %c0_6 = arith.constant 0 : index
    %6 = vector.load %arg4[%c0_5, %c0_6] : memref<2x256xf32, #tpu.memory_space<vmem>>, vector<2x256xf32>
    tpu.vector_store %arg4[%c0_5, %c0_6], %5 {strides = array<i32>} : memref<2x256xf32, #tpu.memory_space<vmem>>, vector<2x256xf32>,
    return
  }
  func.func @transform_0(%arg0: i32) -> (i32, i32) {
    %c0_i32 = arith.constant 0 : i32
    %c0_i32_0 = arith.constant 0 : i32
    return %arg0, %c0_i32 : i32, i32
  }
  func.func @transform_1(%arg0: i32) -> (i32, i32) {
    %c0_i32 = arith.constant 0 : i32
    %c0_i32_0 = arith.constant 0 : i32
    %c0_i32_1 = arith.constant 0 : i32
    return %c0_i32, %c0_i32_0 : i32, i32
  }
  func.func @transform_2(%arg0: i32) -> (i32, i32) {
    %c0_i32 = arith.constant 0 : i32
    %c0_i32_0 = arith.constant 0 : i32
    %c0_i32_1 = arith.constant 0 : i32
    return %c0_i32, %c0_i32_0 : i32, i32
  }
  func.func @transform_3(%arg0: i32) -> (i32, i32) {
    %c0_i32 = arith.constant 0 : i32
    %c0_i32_0 = arith.constant 0 : i32
    return %arg0, %c0_i32 : i32, i32
  }
}

</mosaic_0001>

<llo_original>
// kernel: tpu_custom_call.1
$region0: #{tpu_custom_call.1}
  #allocation0 [shape = 'u32[]', space=smem, size = 0x4, offset = 0x4, fixed_abs, tag = 'smem constant byte address 0x4 - core index']
  #allocation1 [shape = 'u32[144,128]{1,0:T(1,128)}', space=vmem, size = 0x12000, scoped, tag = 'internal scratch']
  %s0 = inlined_call_operand.hbm [shape: f32[2,128], index: 0, kind: input, shape index: {}]
  %s1 = inlined_call_operand.hbm [shape: f32[128,256], index: 1, kind: input, shape index: {}]
  %s2 = inlined_call_operand.vmem [shape: f32[1,256], index: 2, kind: input, shape index: {}]
  %s3 = inlined_call_operand.hbm [shape: f32[2,256], index: 3, kind: output, shape index: {}]
  %s4 = sld [smem:[#allocation0]]
  $region30: #{tpu_custom_call.1} parent=0
    _
  %s6 = ssub.s32 1, %s4
  %s7 = scalar_select 0, %s6, %s4
  $region1: #{tpu_custom_call.1} parent=0
    #allocation2 [shape = 'u8[1024]{0}', space=vmem, size = 0x400, scoped, tag = 'input window, operand 0, single buffered']
    #allocation3 [shape = 's32[1]{0}', space=sflag, size = 0x4, scoped, tag = 'scoped memory for tpu_custom_call.1']
    #allocation4 [shape = 's32[1]{0}', space=sflag, size = 0x4, scoped, tag = 'scoped memory for tpu_custom_call.1']
    #allocation5 [shape = 'u8[131072]{0}', space=vmem, size = 0x20000, scoped, tag = 'input window, operand 1, single buffered']
    #allocation6 [shape = 's32[1]{0}', space=sflag, size = 0x4, scoped, tag = 'scoped memory for tpu_custom_call.1']
    #allocation7 [shape = 'u8[2048]{0}', space=vmem, size = 0x800, scoped, tag = 'output window, operand 0, single buffered']
    %8 = vsyncpa [#allocation3], 0
    %9 = vsyncpa [#allocation6], 0
    %10 = vsyncpa [#allocation4], 0
    // Predicated region
    $region2: #{tpu_custom_call.1} parent=1 // pred_check
      _
    $region3: #{tpu_custom_call.1} parent=1 // pred_check_branch
      %12 = sbr.rel (0) target = $region5
    $region4: #{tpu_custom_call.1} parent=1 // pred_region
      %s14 = ssub.s32 32, 32
      %15 = vsyncadd [#allocation3], %s14
      %s17 = sshll.u32 [#allocation2], 4
      %s18 = int_to_ptr.vmem [resolvable:$true] %s17
      %20 = dma.hbm_to_vmem [thread:$0]  %s0, 32, %s18, [#allocation3]
    $region5: #{tpu_custom_call.1} parent=1 // pred_fallthru
      _
    // Predicated region
    $region6: #{tpu_custom_call.1} parent=1 // pred_check
      _
    $region7: #{tpu_custom_call.1} parent=1 // pred_check_branch
      %22 = sbr.rel (0) target = $region9
    $region8: #{tpu_custom_call.1} parent=1 // pred_region
      %s24 = ssub.s32 4096, 4096
      %25 = vsyncadd [#allocation6], %s24
      %s26 = sshll.u32 [#allocation5], 4
      %s27 = int_to_ptr.vmem [resolvable:$true] %s26
      %32 = dma.hbm_to_vmem [thread:$0]  %s1, 4096, %s27, [#allocation6], 256, 256, 16
    $region9: #{tpu_custom_call.1} parent=1 // pred_fallthru
      _
    // Predicated region
    $region10: #{tpu_custom_call.1} parent=1 // pred_check
      _
    $region11: #{tpu_custom_call.1} parent=1 // pred_check_branch
      %34 = sbr.rel (0) target = $region13
    $region12: #{tpu_custom_call.1} parent=1 // pred_region
      _
    $region13: #{tpu_custom_call.1} parent=1 // pred_fallthru
      _
    // Predicated region
    $region14: #{tpu_custom_call.1} parent=1 // pred_check
      _
    $region15: #{tpu_custom_call.1} parent=1 // pred_check_branch
      %36 = sbr.rel (0) target = $region17
    $region16: #{tpu_custom_call.1} parent=1 // pred_region
      %37 = dma.done [#allocation3], 32
    $region17: #{tpu_custom_call.1} parent=1 // pred_fallthru
      _
    // Predicated region
    $region18: #{tpu_custom_call.1} parent=1 // pred_check
      _
    $region19: #{tpu_custom_call.1} parent=1 // pred_check_branch
      %39 = sbr.rel (0) target = $region21
    $region20: #{tpu_custom_call.1} parent=1 // pred_region
      %40 = dma.done [#allocation6], 4096
    $region21: #{tpu_custom_call.1} parent=1 // pred_fallthru
      _
    %v41 = vld [vmem:[#allocation2] sm:$0x3]
    %v42 = vld [vmem:[#allocation5] sm:$0xff]
    %v43 = vld [vmem:[#allocation5 + $0x8] sm:$0xff]
    %v44 = vld [vmem:[#allocation5 + $0x10] sm:$0xff]
    %v45 = vld [vmem:[#allocation5 + $0x18] sm:$0xff]
    %v46 = vld [vmem:[#allocation5 + $0x20] sm:$0xff]
    %v47 = vld [vmem:[#allocation5 + $0x28] sm:$0xff]
    %v48 = vld [vmem:[#allocation5 + $0x30] sm:$0xff]
    %v49 = vld [vmem:[#allocation5 + $0x38] sm:$0xff]
    %v50 = vld [vmem:[#allocation5 + $0x40] sm:$0xff]
    %v51 = vld [vmem:[#allocation5 + $0x48] sm:$0xff]
    %v52 = vld [vmem:[#allocation5 + $0x50] sm:$0xff]
    %v53 = vld [vmem:[#allocation5 + $0x58] sm:$0xff]
    %v54 = vld [vmem:[#allocation5 + $0x60] sm:$0xff]
    %v55 = vld [vmem:[#allocation5 + $0x68] sm:$0xff]
    %v56 = vld [vmem:[#allocation5 + $0x70] sm:$0xff]
    %v57 = vld [vmem:[#allocation5 + $0x78] sm:$0xff]
    %v58 = vld [vmem:[#allocation5 + $0x80] sm:$0xff]
    %v59 = vld [vmem:[#allocation5 + $0x88] sm:$0xff]
    %v60 = vld [vmem:[#allocation5 + $0x90] sm:$0xff]
    %v61 = vld [vmem:[#allocation5 + $0x98] sm:$0xff]
    %v62 = vld [vmem:[#allocation5 + $0xa0] sm:$0xff]
    %v63 = vld [vmem:[#allocation5 + $0xa8] sm:$0xff]
    %v64 = vld [vmem:[#allocation5 + $0xb0] sm:$0xff]
    %v65 = vld [vmem:[#allocation5 + $0xb8] sm:$0xff]
    %v66 = vld [vmem:[#allocation5 + $0xc0] sm:$0xff]
    %v67 = vld [vmem:[#allocation5 + $0xc8] sm:$0xff]
    %v68 = vld [vmem:[#allocation5 + $0xd0] sm:$0xff]
    %v69 = vld [vmem:[#allocation5 + $0xd8] sm:$0xff]
    %v70 = vld [vmem:[#allocation5 + $0xe0] sm:$0xff]
    %v71 = vld [vmem:[#allocation5 + $0xe8] sm:$0xff]
    %v72 = vld [vmem:[#allocation5 + $0xf0] sm:$0xff]
    %v73 = vld [vmem:[#allocation5 + $0xf8] sm:$0xff]
    %v74 = vld [vmem:[%s2] sm:$0x3]
    %v76 = vlaneseq
    %v77 = vshrl.u32 %v76, 7
    %v78 = vsub.s32 0, %v77
    %v79 = vrot.slane %v74, %v78
    %v80 = vlaneseq
    %v81 = vshrl.u32 %v80, 7
    %v82 = vsub.s32 1, %v81
    %v83 = vrot.slane %v74, %v82
    %86 = vmatprep.subr.mxu0 %v43
    %87 = vmatpush1.msra.mxu0 %v42
    %88 = vmatprep.subr.mxu0 %v45
    %89 = vmatpush1.msra.mxu0 %v44
    %90 = vmatprep.subr.mxu0 %v47
    %91 = vmatpush1.msra.mxu0 %v46
    %92 = vmatprep.subr.mxu0 %v49
    %93 = vmatpush1.msra.mxu0 %v48
    %94 = vmatprep.subr.mxu0 %v51
    %95 = vmatpush1.msra.mxu0 %v50
    %96 = vmatprep.subr.mxu0 %v53
    %97 = vmatpush1.msra.mxu0 %v52
    %98 = vmatprep.subr.mxu0 %v55
    %99 = vmatpush1.msra.mxu0 %v54
    %100 = vmatprep.subr.mxu0 %v57
    %101 = vmatpush1.msra.mxu0 %v56
    %102 = vmatprep.subr.mxu0 %v59
    %103 = vmatpush1.msra.mxu0 %v58
    %104 = vmatprep.subr.mxu0 %v61
    %105 = vmatpush1.msra.mxu0 %v60
    %106 = vmatprep.subr.mxu0 %v63
    %107 = vmatpush1.msra.mxu0 %v62
    %108 = vmatprep.subr.mxu0 %v65
    %109 = vmatpush1.msra.mxu0 %v64
    %110 = vmatprep.subr.mxu0 %v67
    %111 = vmatpush1.msra.mxu0 %v66
    %112 = vmatprep.subr.mxu0 %v69
    %113 = vmatpush1.msra.mxu0 %v68
    %114 = vmatprep.subr.mxu0 %v71
    %115 = vmatpush1.msra.mxu0 %v70
    %116 = vmatprep.subr.mxu0 %v73
    %117 = vmatpush1.msra.mxu0 %v72
    %118 = vmatprep.subr.mxu0 0.0
    %119 = vmatpush1.msra.mxu0 0.0
    %120 = vmatprep.subr.mxu0 0.0
    %121 = vmatpush1.msra.mxu0 0.0
    %122 = vmatprep.subr.mxu0 0.0
    %123 = vmatpush1.msra.mxu0 0.0
    %124 = vmatprep.subr.mxu0 0.0
    %125 = vmatpush1.msra.mxu0 0.0
    %126 = vmatprep.subr.mxu0 0.0
    %127 = vmatpush1.msra.mxu0 0.0
    %128 = vmatprep.subr.mxu0 0.0
    %129 = vmatpush1.msra.mxu0 0.0
    %130 = vmatprep.subr.mxu0 0.0
    %131 = vmatpush1.msra.mxu0 0.0
    %132 = vmatprep.subr.mxu0 0.0
    %133 = vmatpush1.msra.mxu0 0.0
    %134 = vmatprep.subr.mxu0 0.0
    %135 = vmatpush1.msra.mxu0 0.0
    %136 = vmatprep.subr.mxu0 0.0
    %137 = vmatpush1.msra.mxu0 0.0
    %138 = vmatprep.subr.mxu0 0.0
    %139 = vmatpush1.msra.mxu0 0.0
    %140 = vmatprep.subr.mxu0 0.0
    %141 = vmatpush1.msra.mxu0 0.0
    %142 = vmatprep.subr.mxu0 0.0
    %143 = vmatpush1.msra.mxu0 0.0
    %144 = vmatprep.subr.mxu0 0.0
    %145 = vmatpush1.msra.mxu0 0.0
    %146 = vmatprep.subr.mxu0 0.0
    %147 = vmatpush1.msra.mxu0 0.0
    %148 = vmatprep.subr.mxu0 0.0
    %149 = vmatpush1.msra.mxu0 0.0
    %150 = vmatprep.mubr.f32.mxu0 0.0
    %151 = vmatmul.mubr.f32.gmra.mrb[0].mxu0 %v41
    %v152 = vpop.f32.mrb[0].mxu0
    %v153 = vadd.f32 %v79, %v152
    %v154 = vpop.f32.mrb[0].mxu0
    %v155 = vadd.f32 %v83, %v154
    %156 = vdwg.mxu0
    %v159 = vcombine.low %v153, %v155
    %v161 = vunpack.c.l.s4 1983009808
    %v162 = vunpack.c.0.s8 %v161
    %v163 = vlaneseq
    %v164 = vshrl.u32 %v163, 7
    %v165 = vsub.s32 %v162, %v164
    %v166 = vrot.slane %v159, %v165
    %168 = vst [vmem:[#allocation7] sm:$0xf] %v166
    // Predicated region
    $region22: #{tpu_custom_call.1} parent=1 // pred_check
      _
    $region23: #{tpu_custom_call.1} parent=1 // pred_check_branch
      %170 = sbr.rel (0) target = $region25
    $region24: #{tpu_custom_call.1} parent=1 // pred_region
      %s172 = ssub.s32 64, 64
      %173 = vsyncadd [#allocation4], %s172
      %s175 = sshll.u32 [#allocation7], 4
      %s176 = int_to_ptr.vmem [resolvable:$true] %s175
      %178 = dma.vmem_to_hbm [thread:$0]  %s176, 64, %s3, [#allocation4]
    $region25: #{tpu_custom_call.1} parent=1 // pred_fallthru
      _
    // Predicated region
    $region26: #{tpu_custom_call.1} parent=1 // pred_check
      _
    $region27: #{tpu_custom_call.1} parent=1 // pred_check_branch
      %180 = sbr.rel (0) target = $region29
    $region28: #{tpu_custom_call.1} parent=1 // pred_region
      %181 = dma.done [#allocation4], 64
    $region29: #{tpu_custom_call.1} parent=1 // pred_fallthru
      _
    %182 = vsyncpa [#allocation3], 1
    %183 = vsyncpa [#allocation6], 1
    %184 = vsyncpa [#allocation4], 1

</llo_original>
